<compile_context>
chip_gen: v7x
topology: tpu7x:2x2x1
jax: 0.10.0
libtpu: 0.0.40
codegen_flags: <defaults>
</compile_context>

<pallas_src>
import functools
import math

import jax
import jax.numpy as jnp
from jax import lax
from jax.experimental import pallas as pl
from jax.experimental.pallas import tpu as pltpu


def _cdiv(a, b):
    return -(-a // b)


def _round_up(a, b):
    return _cdiv(a, b) * b


def _has_native_bf16_vpu():
    """v6e/v7x VALUs execute bf16 natively; v5e and older do not."""
    try:
        kind = jax.devices()[0].device_kind.lower()
    except Exception:
        return False
    return not any(old in kind for old in ("v2", "v3", "v4", "v5"))


def _gelu(h, compute_dtype, approximate):
    """GELU in `compute_dtype`.  Exact erf form matches torch.nn.GELU() default."""
    hc = h.astype(compute_dtype)
    if approximate:
        # tanh approximation (same constants as torch approximate='tanh' /
        # jax.nn.gelu(approximate=True)); tanh runs on the EUP slot.
        inner = 0.7978845608028654 * (hc + 0.044715 * (hc * hc * hc))
        return 0.5 * hc * (1.0 + jnp.tanh(inner))
    return 0.5 * hc * (1.0 + lax.erf(hc * 0.7071067811865476))


def _mlp_kernel(x_ref, w1_ref, b1_ref, w2_ref, b2_ref, w34_ref, b34_ref, o_ref,
                *, mm_dtype, gelu_dtype, approximate_gelu):
    # In-kernel cast of the activation tile (cheap VPU op hidden under the matmul;
    # avoids an extra wrapper-side HBM read+write pass of x in the bf16 path).
    x = x_ref[...].astype(mm_dtype)

    # Layer 1: (T, d) @ (d, 2d) + b1 -> GELU   (f32 accumulation)
    h = jnp.dot(x, w1_ref[...], preferred_element_type=jnp.float32) + b1_ref[...]
    h = _gelu(h, gelu_dtype, approximate_gelu)

    # Layer 2: (T, 2d) @ (2d, d) + b2 -> GELU
    h = jnp.dot(h.astype(mm_dtype), w2_ref[...],
                preferred_element_type=jnp.float32) + b2_ref[...]
    h = _gelu(h, gelu_dtype, approximate_gelu)

    # Fused layers 3+4: y[0, r] = <h[r, :], w34> + b34.  Contract the LAST dims of
    # both operands -> (1, tile_rows): no materialized transpose of the big (T, d)
    # activation, and the per-row scalars land lane-dense for a full-width store.
    y = lax.dot_general(w34_ref[...].astype(h.dtype), h,
                        dimension_numbers=(((1,), (1,)), ((), ())),
                        preferred_element_type=jnp.float32)
    y = y + b34_ref[...]

    o_ref[...] = y.astype(o_ref.dtype)


@functools.partial(
    jax.jit,
    static_argnames=("tile_rows", "use_bf16_matmul", "approximate_gelu",
                     "single_buffer_weights", "bf16_gelu"))
def _forward_impl(x, params, tile_rows, use_bf16_matmul, approximate_gelu,
                  single_buffer_weights, bf16_gelu):
    w1, b1, w2, b2, w3, b3, w4, b4 = params
    d_model = x.shape[-1]
    d2 = w1.shape[1]                      # 2 * d_model
    lead_shape = x.shape[:-1]
    rows = math.prod(lead_shape)          # static python int
    out_dtype = x.dtype
    x2 = x.reshape(rows, d_model)

    # ---- Fuse the last two linear layers (one linear map, no nonlinearity between).
    w34 = (w3.astype(jnp.float32) @ w4.astype(jnp.float32)).reshape(1, d_model)
    b34 = (b3.astype(jnp.float32) @ w4.astype(jnp.float32)
           + b4.astype(jnp.float32)).reshape(1, 1)

    # ---- Matmul dtype.  x is NOT cast here; it is cast inside the kernel.  Weights
    # are cast only if the caller did not already pass bf16 weights.
    mm_dtype = jnp.bfloat16 if use_bf16_matmul else jnp.float32
    w1c = w1.astype(mm_dtype)
    w2c = w2.astype(mm_dtype)
    b1c = b1.astype(jnp.float32)
    b2c = b2.astype(jnp.float32)
    gelu_dtype = jnp.bfloat16 if bf16_gelu else jnp.float32

    # ---- Row tiling.  bf16 packs 2 rows per sublane -> align to 16 there.
    align = 16 if mm_dtype == jnp.bfloat16 else 8
    tile_rows = max(align, tile_rows - tile_rows % align)
    if rows <= tile_rows:
        if rows >= 256:
            # Big single-tile input: split into two tiles so a v7x megacore can run
            # one tile per TensorCore via dimension_semantics=("parallel",).
            tile_rows = _round_up(_cdiv(rows, 2), align)
        else:
            tile_rows = rows        # full-extent row block (legal for any row count)
    num_tiles = _cdiv(rows, tile_rows)
    if num_tiles > 1 and num_tiles % 2 == 1:
        # Prefer an even tile count so the two v7x TensorCores stay balanced.
        cand = max(align, _round_up(_cdiv(rows, num_tiles + 1), align))
        if _cdiv(rows, cand) % 2 == 0:
            tile_rows, num_tiles = cand, _cdiv(rows, cand)

    # ---- VMEM budget, derived per generation (~85% of physical capacity).
    try:
        vmem_cap = int(pltpu.get_tpu_info().vmem_capacity_bytes)
    except Exception:
        vmem_cap = 64 * 1024 * 1024          # conservative (v7x-sized) fallback
    isz = jnp.dtype(mm_dtype).itemsize
    weight_bufs = 1 if single_buffer_weights else 2
    est_bytes = (
        2 * tile_rows * d_model * jnp.dtype(x.dtype).itemsize       # x tile (dbl buf)
        + 2 * tile_rows * jnp.dtype(out_dtype).itemsize             # out tile (dbl buf)
        + weight_bufs * (d_model * d2 * isz + d2 * 4                # w1, b1
                         + d2 * d_model * isz + d_model * 4         # w2, b2
                         + d_model * 4 + 4)                         # w34, b34
        + 4 * tile_rows * (d2 + d_model)                            # f32 intermediates
        + 4 * tile_rows * d2                                        # headroom
    )
    vmem_limit = int(min(max(int(1.5 * est_bytes), 32 * 1024 * 1024),
                         int(0.85 * vmem_cap)))

    def _const_spec(shape):
        # Grid-invariant operands (constant index map): single-buffer them so the
        # resident weights cost 1x, not 2x, VMEM (biggest win on v7x's 64 MiB).
        if single_buffer_weights:
            return pl.BlockSpec(shape, lambda i: (0, 0),
                                pipeline_mode=pl.Buffered(1))
        return pl.BlockSpec(shape, lambda i: (0, 0))

    kernel = functools.partial(_mlp_kernel, mm_dtype=mm_dtype,
                               gelu_dtype=gelu_dtype,
                               approximate_gelu=approximate_gelu)

    out = pl.pallas_call(
        kernel,
        out_shape=jax.ShapeDtypeStruct((num_tiles, 1, tile_rows), out_dtype),
        grid_spec=pltpu.PrefetchScalarGridSpec(
            num_scalar_prefetch=0,
            grid=(num_tiles,),
            in_specs=[
                pl.BlockSpec((tile_rows, d_model), lambda i: (i, 0)),  # x tile
                _const_spec((d_model, d2)),                            # w1
                _const_spec((1, d2)),                                  # b1
                _const_spec((d2, d_model)),                            # w2
                _const_spec((1, d_model)),                             # b2
                _const_spec((1, d_model)),                             # w34 (fused 3+4)
                _const_spec((1, 1)),                                   # b34
            ],
            # Lane-dense output: one (1, tile_rows) full-width row of scalars per step.
            out_specs=pl.BlockSpec((None, 1, tile_rows), lambda i: (i, 0, 0)),
        ),
        compiler_params=pltpu.CompilerParams(
            dimension_semantics=("parallel",),   # shard row tiles across v7x's 2 TCs
            vmem_limit_bytes=vmem_limit,
        ),
    )(x2, w1c, b1c, w2c, b2c, w34, b34)

    out = out.reshape(num_tiles * tile_rows)[:rows]   # drop ragged-tail garbage rows
    return out.reshape(lead_shape)


def stability_regressor_forward(x, params, *, tile_rows=512,
                                use_bf16_matmul=False, approximate_gelu=False):
    """x: (..., d_model) -> (...,).

    use_bf16_matmul: bf16 MXU inputs with f32 accumulation -- a win on ALL TPU
    generations (v5e/v6e/v7x).  approximate_gelu: tanh GELU (EUP) instead of exact
    erf (VALU polynomial); faster, slightly different numerics vs torch default.
    """
    common = dict(tile_rows=tile_rows, use_bf16_matmul=use_bf16_matmul,
                  approximate_gelu=approximate_gelu)
    try:
        # Preferred configuration: single-buffered resident weights and (on chips
        # with a native bf16 VPU) bf16 GELU when the bf16 MXU path is enabled.
        return _forward_impl(
            x, params, single_buffer_weights=True,
            bf16_gelu=bool(use_bf16_matmul and _has_native_bf16_vpu()), **common)
    except Exception:
        # Conservative fallback for Pallas/Mosaic versions lacking
        # pipeline_mode=pl.Buffered(1) or bf16 transcendental lowering.
        return _forward_impl(x, params, single_buffer_weights=False,
                             bf16_gelu=False, **common)


def init_params(key, d_model, dtype=jnp.float32):
    """Synthetic parameters matching the nn.Sequential shapes.

    Weights stored transposed vs. torch (in_features, out_features) so the kernel
    does x @ W + b directly.  Biases stored as (1, out).
    """
    dims = [(d_model, d_model * 2),
            (d_model * 2, d_model),
            (d_model, d_model // 2),
            (d_model // 2, 1)]
    params = []
    keys = jax.random.split(key, 2 * len(dims))
    for idx, (fin, fout) in enumerate(dims):
        bound = 1.0 / jnp.sqrt(fin)
        w = jax.random.uniform(keys[2 * idx], (fin, fout), dtype,
                               minval=-bound, maxval=bound)
        b = jax.random.uniform(keys[2 * idx + 1], (1, fout), dtype,
                               minval=-bound, maxval=bound)
        params += [w, b]
    return tuple(params)


def _reference_forward(x, params, approximate=False):
    w1, b1, w2, b2, w3, b3, w4, b4 = params
    h = jax.nn.gelu(x @ w1 + b1[0], approximate=approximate)
    h = jax.nn.gelu(h @ w2 + b2[0], approximate=approximate)
    h = h @ w3 + b3[0]
    y = h @ w4 + b4[0]
    return jnp.squeeze(y, axis=-1)


if __name__ == "__main__":
    d_model = 32
    batch, seq = 2, 8

    key = jax.random.PRNGKey(0)
    k_x, k_p, k_r = jax.random.split(key, 3)
    x = jax.random.normal(k_x, (batch, seq, d_model), dtype=jnp.float32)
    params = init_params(k_p, d_model)

    ref = _reference_forward(x, params)

    # Default path: f32 matmuls, exact (erf) GELU -- matches torch.nn.GELU().
    out = jax.block_until_ready(stability_regressor_forward(x, params))
    assert out.shape == (batch, seq), out.shape
    assert jnp.allclose(out, ref, atol=5e-5, rtol=5e-5), float(
        jnp.max(jnp.abs(out - ref)))

    # Ragged row count (21 rows: not a multiple of 8 nor of tile_rows), both as a
    # single full-extent tile and as multiple tiles with a partial tail block.
    xr = jax.random.normal(k_r, (3, 7, d_model), dtype=jnp.float32)
    refr = _reference_forward(xr, params)
    outr = jax.block_until_ready(stability_regressor_forward(xr, params))
    assert outr.shape == (3, 7), outr.shape
    assert jnp.allclose(outr, refr, atol=5e-5, rtol=5e-5), float(
        jnp.max(jnp.abs(outr - refr)))
    outr8 = jax.block_until_ready(
        stability_regressor_forward(xr, params, tile_rows=8))
    assert outr8.shape == (3, 7), outr8.shape
    assert jnp.allclose(outr8, refr, atol=5e-5, rtol=5e-5), float(
        jnp.max(jnp.abs(outr8 - refr)))

    # bf16-MXU perf path (all generations incl. v5e): f32 accumulation, looser tol.
    out_bf16 = jax.block_until_ready(
        stability_regressor_forward(x, params, use_bf16_matmul=True))
    assert out_bf16.shape == (batch, seq), out_bf16.shape
    assert jnp.allclose(out_bf16, ref, atol=1e-1, rtol=1e-1), float(
        jnp.max(jnp.abs(out_bf16 - ref)))

    # tanh-approximate GELU perf path: tight check vs a tanh-GELU reference.
    ref_tanh = _reference_forward(x, params, approximate=True)
    out_tanh = jax.block_until_ready(
        stability_regressor_forward(x, params, approximate_gelu=True))
    assert out_tanh.shape == (batch, seq), out_tanh.shape
    assert jnp.allclose(out_tanh, ref_tanh, atol=5e-5, rtol=5e-5), float(
        jnp.max(jnp.abs(out_tanh - ref_tanh)))

    print("KERNEL_OK")
</pallas_src>

<mosaic_0001>
module attributes {stable_mosaic.version = 11 : i64} {
  func.func @_mlp_kernel(%arg0: i32, %arg1: memref<16x32xf32, #tpu.memory_space<vmem>>, %arg2: memref<32x64xf32, #tpu.memory_space<vmem>>, %arg3: memref<1x64xf32, #tpu.memory_space<vmem>>, %arg4: memref<64x32xf32, #tpu.memory_space<vmem>>, %arg5: memref<1x32xf32, #tpu.memory_space<vmem>>, %arg6: memref<1x32xf32, #tpu.memory_space<vmem>>, %arg7: memref<1x1xf32, #tpu.memory_space<vmem>>, %arg8: memref<1x1x16xf32, #tpu.memory_space<vmem>>) attributes {dimension_semantics = [#tpu.dimension_semantics<parallel>], iteration_bounds = array<i64: 1>, scalar_prefetch = 0 : i64, scratch_operands = 0 : i64, tpu.core_type = #tpu.core_type<tc>, window_params = [{transform_indices = @transform_0, window_bounds = array<i64: 16, 32>}, {pipeline_mode = #tpu.pipeline_mode<synchronous>, transform_indices = @transform_1, window_bounds = array<i64: 32, 64>}, {pipeline_mode = #tpu.pipeline_mode<synchronous>, transform_indices = @transform_2, window_bounds = array<i64: 1, 64>}, {pipeline_mode = #tpu.pipeline_mode<synchronous>, transform_indices = @transform_3, window_bounds = array<i64: 64, 32>}, {pipeline_mode = #tpu.pipeline_mode<synchronous>, transform_indices = @transform_4, window_bounds = array<i64: 1, 32>}, {pipeline_mode = #tpu.pipeline_mode<synchronous>, transform_indices = @transform_5, window_bounds = array<i64: 1, 32>}, {pipeline_mode = #tpu.pipeline_mode<synchronous>, transform_indices = @transform_6, window_bounds = array<i64: 1, 1>}, {transform_indices = @transform_7, window_bounds = array<i64: 1, 1, 16>}]} {
    %c0 = arith.constant 0 : index
    %c0_0 = arith.constant 0 : index
    %0 = vector.load %arg1[%c0, %c0_0] : memref<16x32xf32, #tpu.memory_space<vmem>>, vector<16x32xf32>
    %c0_1 = arith.constant 0 : index
    %c0_2 = arith.constant 0 : index
    %1 = vector.load %arg2[%c0_1, %c0_2] : memref<32x64xf32, #tpu.memory_space<vmem>>, vector<32x64xf32>
    %cst = arith.constant dense<0.000000e+00> : vector<16x64xf32>
    %2 = tpu.matmul %0, %1, %cst {dimension_numbers = #tpu.dot_dimension_numbers<[1], [0], [0], [1], [0, 0, 1, 1], [], []>} : vector<16x32xf32>, vector<32x64xf32>, vector<16x64xf32> -> vector<16x64xf32>
    %c0_3 = arith.constant 0 : index
    %c0_4 = arith.constant 0 : index
    %3 = vector.load %arg3[%c0_3, %c0_4] : memref<1x64xf32, #tpu.memory_space<vmem>>, vector<1x64xf32>
    %4 = vector.broadcast %3 : vector<1x64xf32> to vector<16x64xf32>
    %5 = arith.addf %2, %4 : vector<16x64xf32>
    %cst_5 = arith.constant 5.000000e-01 : f32
    %6 = vector.broadcast %cst_5 : f32 to vector<16x64xf32>
    %7 = arith.mulf %6, %5 : vector<16x64xf32>
    %cst_6 = arith.constant 0.707106769 : f32
    %8 = vector.broadcast %cst_6 : f32 to vector<16x64xf32>
    %9 = arith.mulf %5, %8 : vector<16x64xf32>
    %10 = math.erf %9 : vector<16x64xf32>
    %cst_7 = arith.constant 1.000000e+00 : f32
    %11 = vector.broadcast %cst_7 : f32 to vector<16x64xf32>
    %12 = arith.addf %11, %10 : vector<16x64xf32>
    %13 = arith.mulf %7, %12 : vector<16x64xf32>
    %c0_8 = arith.constant 0 : index
    %c0_9 = arith.constant 0 : index
    %14 = vector.load %arg4[%c0_8, %c0_9] : memref<64x32xf32, #tpu.memory_space<vmem>>, vector<64x32xf32>
    %cst_10 = arith.constant dense<0.000000e+00> : vector<16x32xf32>
    %15 = tpu.matmul %13, %14, %cst_10 {dimension_numbers = #tpu.dot_dimension_numbers<[1], [0], [0], [1], [0, 0, 1, 1], [], []>} : vector<16x64xf32>, vector<64x32xf32>, vector<16x32xf32> -> vector<16x32xf32>
    %c0_11 = arith.constant 0 : index
    %c0_12 = arith.constant 0 : index
    %16 = vector.load %arg5[%c0_11, %c0_12] : memref<1x32xf32, #tpu.memory_space<vmem>>, vector<1x32xf32>
    %17 = vector.broadcast %16 : vector<1x32xf32> to vector<16x32xf32>
    %18 = arith.addf %15, %17 : vector<16x32xf32>
    %cst_13 = arith.constant 5.000000e-01 : f32
    %19 = vector.broadcast %cst_13 : f32 to vector<16x32xf32>
    %20 = arith.mulf %19, %18 : vector<16x32xf32>
    %cst_14 = arith.constant 0.707106769 : f32
    %21 = vector.broadcast %cst_14 : f32 to vector<16x32xf32>
    %22 = arith.mulf %18, %21 : vector<16x32xf32>
    %23 = math.erf %22 : vector<16x32xf32>
    %cst_15 = arith.constant 1.000000e+00 : f32
    %24 = vector.broadcast %cst_15 : f32 to vector<16x32xf32>
    %25 = arith.addf %24, %23 : vector<16x32xf32>
    %26 = arith.mulf %20, %25 : vector<16x32xf32>
    %c0_16 = arith.constant 0 : index
    %c0_17 = arith.constant 0 : index
    %27 = vector.load %arg6[%c0_16, %c0_17] : memref<1x32xf32, #tpu.memory_space<vmem>>, vector<1x32xf32>
    %cst_18 = arith.constant dense<0.000000e+00> : vector<1x16xf32>
    %28 = tpu.matmul %27, %26, %cst_18 {dimension_numbers = #tpu.dot_dimension_numbers<[1], [1], [0], [0], [0, 0, 1, 0], [], []>} : vector<1x32xf32>, vector<16x32xf32>, vector<1x16xf32> -> vector<1x16xf32>
    %c0_19 = arith.constant 0 : index
    %c0_20 = arith.constant 0 : index
    %29 = vector.load %arg7[%c0_19, %c0_20] : memref<1x1xf32, #tpu.memory_space<vmem>>, vector<1x1xf32>
    %30 = vector.broadcast %29 : vector<1x1xf32> to vector<1x16xf32>
    %31 = arith.addf %28, %30 : vector<1x16xf32>
    %c0_21 = arith.constant 0 : index
    %c0_22 = arith.constant 0 : index
    %c0_23 = arith.constant 0 : index
    %32 = vector.load %arg8[%c0_21, %c0_22, %c0_23] : memref<1x1x16xf32, #tpu.memory_space<vmem>>, vector<1x1x16xf32>
    %33 = vector.shape_cast %32 : vector<1x1x16xf32> to vector<1x16xf32>
    %34 = vector.shape_cast %31 : vector<1x16xf32> to vector<1x1x16xf32>
    tpu.vector_store %arg8[%c0_21, %c0_22, %c0_23], %34 {strides = array<i32>} : memref<1x1x16xf32, #tpu.memory_space<vmem>>, vector<1x1x16xf32>,
    return
  }
  func.func @transform_0(%arg0: i32) -> (i32, i32) {
    %c0_i32 = arith.constant 0 : i32
    %c0_i32_0 = arith.constant 0 : i32
    return %arg0, %c0_i32 : i32, i32
  }
  func.func @transform_1(%arg0: i32) -> (i32, i32) {
    %c0_i32 = arith.constant 0 : i32
    %c0_i32_0 = arith.constant 0 : i32
    %c0_i32_1 = arith.constant 0 : i32
    return %c0_i32, %c0_i32_0 : i32, i32
  }
  func.func @transform_2(%arg0: i32) -> (i32, i32) {
    %c0_i32 = arith.constant 0 : i32
    %c0_i32_0 = arith.constant 0 : i32
    %c0_i32_1 = arith.constant 0 : i32
    return %c0_i32, %c0_i32_0 : i32, i32
  }
  func.func @transform_3(%arg0: i32) -> (i32, i32) {
    %c0_i32 = arith.constant 0 : i32
    %c0_i32_0 = arith.constant 0 : i32
    %c0_i32_1 = arith.constant 0 : i32
    return %c0_i32, %c0_i32_0 : i32, i32
  }
  func.func @transform_4(%arg0: i32) -> (i32, i32) {
    %c0_i32 = arith.constant 0 : i32
    %c0_i32_0 = arith.constant 0 : i32
    %c0_i32_1 = arith.constant 0 : i32
    return %c0_i32, %c0_i32_0 : i32, i32
  }
  func.func @transform_5(%arg0: i32) -> (i32, i32) {
    %c0_i32 = arith.constant 0 : i32
    %c0_i32_0 = arith.constant 0 : i32
    %c0_i32_1 = arith.constant 0 : i32
    return %c0_i32, %c0_i32_0 : i32, i32
  }
  func.func @transform_6(%arg0: i32) -> (i32, i32) {
    %c0_i32 = arith.constant 0 : i32
    %c0_i32_0 = arith.constant 0 : i32
    %c0_i32_1 = arith.constant 0 : i32
    return %c0_i32, %c0_i32_0 : i32, i32
  }
  func.func @transform_7(%arg0: i32) -> (i32, i32, i32) {
    %c0_i32 = arith.constant 0 : i32
    %c0_i32_0 = arith.constant 0 : i32
    %c0_i32_1 = arith.constant 0 : i32
    return %arg0, %c0_i32, %c0_i32_0 : i32, i32, i32
  }
}

module attributes {stable_mosaic.version = 11 : i64} {
  func.func @_mlp_kernel(%arg0: i32, %arg1: memref<16x32xf32, #tpu.memory_space<vmem>>, %arg2: memref<32x64xf32, #tpu.memory_space<vmem>>, %arg3: memref<1x64xf32, #tpu.memory_space<vmem>>, %arg4: memref<64x32xf32, #tpu.memory_space<vmem>>, %arg5: memref<1x32xf32, #tpu.memory_space<vmem>>, %arg6: memref<1x32xf32, #tpu.memory_space<vmem>>, %arg7: memref<1x1xf32, #tpu.memory_space<vmem>>, %arg8: memref<1x1x16xf32, #tpu.memory_space<vmem>>) attributes {dimension_semantics = [#tpu.dimension_semantics<parallel>], iteration_bounds = array<i64: 1>, scalar_prefetch = 0 : i64, scratch_operands = 0 : i64, tpu.core_type = #tpu.core_type<tc>, window_params = [{transform_indices = @transform_0, window_bounds = array<i64: 16, 32>}, {pipeline_mode = #tpu.pipeline_mode<synchronous>, transform_indices = @transform_1, window_bounds = array<i64: 32, 64>}, {pipeline_mode = #tpu.pipeline_mode<synchronous>, transform_indices = @transform_2, window_bounds = array<i64: 1, 64>}, {pipeline_mode = #tpu.pipeline_mode<synchronous>, transform_indices = @transform_3, window_bounds = array<i64: 64, 32>}, {pipeline_mode = #tpu.pipeline_mode<synchronous>, transform_indices = @transform_4, window_bounds = array<i64: 1, 32>}, {pipeline_mode = #tpu.pipeline_mode<synchronous>, transform_indices = @transform_5, window_bounds = array<i64: 1, 32>}, {pipeline_mode = #tpu.pipeline_mode<synchronous>, transform_indices = @transform_6, window_bounds = array<i64: 1, 1>}, {transform_indices = @transform_7, window_bounds = array<i64: 1, 1, 16>}]} {
    %c0 = arith.constant 0 : index
    %c0_0 = arith.constant 0 : index
    %0 = vector.load %arg1[%c0, %c0_0] : memref<16x32xf32, #tpu.memory_space<vmem>>, vector<16x32xf32>
    %c0_1 = arith.constant 0 : index
    %c0_2 = arith.constant 0 : index
    %1 = vector.load %arg2[%c0_1, %c0_2] : memref<32x64xf32, #tpu.memory_space<vmem>>, vector<32x64xf32>
    %cst = arith.constant dense<0.000000e+00> : vector<16x64xf32>
    %2 = tpu.matmul %0, %1, %cst {dimension_numbers = #tpu.dot_dimension_numbers<[1], [0], [0], [1], [0, 0, 1, 1], [], []>} : vector<16x32xf32>, vector<32x64xf32>, vector<16x64xf32> -> vector<16x64xf32>
    %c0_3 = arith.constant 0 : index
    %c0_4 = arith.constant 0 : index
    %3 = vector.load %arg3[%c0_3, %c0_4] : memref<1x64xf32, #tpu.memory_space<vmem>>, vector<1x64xf32>
    %4 = vector.broadcast %3 : vector<1x64xf32> to vector<16x64xf32>
    %5 = arith.addf %2, %4 : vector<16x64xf32>
    %cst_5 = arith.constant 5.000000e-01 : f32
    %6 = vector.broadcast %cst_5 : f32 to vector<16x64xf32>
    %7 = arith.mulf %6, %5 : vector<16x64xf32>
    %cst_6 = arith.constant 0.707106769 : f32
    %8 = vector.broadcast %cst_6 : f32 to vector<16x64xf32>
    %9 = arith.mulf %5, %8 : vector<16x64xf32>
    %10 = math.erf %9 : vector<16x64xf32>
    %cst_7 = arith.constant 1.000000e+00 : f32
    %11 = vector.broadcast %cst_7 : f32 to vector<16x64xf32>
    %12 = arith.addf %11, %10 : vector<16x64xf32>
    %13 = arith.mulf %7, %12 : vector<16x64xf32>
    %c0_8 = arith.constant 0 : index
    %c0_9 = arith.constant 0 : index
    %14 = vector.load %arg4[%c0_8, %c0_9] : memref<64x32xf32, #tpu.memory_space<vmem>>, vector<64x32xf32>
    %cst_10 = arith.constant dense<0.000000e+00> : vector<16x32xf32>
    %15 = tpu.matmul %13, %14, %cst_10 {dimension_numbers = #tpu.dot_dimension_numbers<[1], [0], [0], [1], [0, 0, 1, 1], [], []>} : vector<16x64xf32>, vector<64x32xf32>, vector<16x32xf32> -> vector<16x32xf32>
    %c0_11 = arith.constant 0 : index
    %c0_12 = arith.constant 0 : index
    %16 = vector.load %arg5[%c0_11, %c0_12] : memref<1x32xf32, #tpu.memory_space<vmem>>, vector<1x32xf32>
    %17 = vector.broadcast %16 : vector<1x32xf32> to vector<16x32xf32>
    %18 = arith.addf %15, %17 : vector<16x32xf32>
    %cst_13 = arith.constant 5.000000e-01 : f32
    %19 = vector.broadcast %cst_13 : f32 to vector<16x32xf32>
    %20 = arith.mulf %19, %18 : vector<16x32xf32>
    %cst_14 = arith.constant 0.707106769 : f32
    %21 = vector.broadcast %cst_14 : f32 to vector<16x32xf32>
    %22 = arith.mulf %18, %21 : vector<16x32xf32>
    %23 = math.erf %22 : vector<16x32xf32>
    %cst_15 = arith.constant 1.000000e+00 : f32
    %24 = vector.broadcast %cst_15 : f32 to vector<16x32xf32>
    %25 = arith.addf %24, %23 : vector<16x32xf32>
    %26 = arith.mulf %20, %25 : vector<16x32xf32>
    %c0_16 = arith.constant 0 : index
    %c0_17 = arith.constant 0 : index
    %27 = vector.load %arg6[%c0_16, %c0_17] : memref<1x32xf32, #tpu.memory_space<vmem>>, vector<1x32xf32>
    %cst_18 = arith.constant dense<0.000000e+00> : vector<1x16xf32>
    %28 = tpu.matmul %27, %26, %cst_18 {dimension_numbers = #tpu.dot_dimension_numbers<[1], [1], [0], [0], [0, 0, 1, 0], [], []>} : vector<1x32xf32>, vector<16x32xf32>, vector<1x16xf32> -> vector<1x16xf32>
    %c0_19 = arith.constant 0 : index
    %c0_20 = arith.constant 0 : index
    %29 = vector.load %arg7[%c0_19, %c0_20] : memref<1x1xf32, #tpu.memory_space<vmem>>, vector<1x1xf32>
    %30 = vector.broadcast %29 : vector<1x1xf32> to vector<1x16xf32>
    %31 = arith.addf %28, %30 : vector<1x16xf32>
    %c0_21 = arith.constant 0 : index
    %c0_22 = arith.constant 0 : index
    %c0_23 = arith.constant 0 : index
    %32 = vector.load %arg8[%c0_21, %c0_22, %c0_23] : memref<1x1x16xf32, #tpu.memory_space<vmem>>, vector<1x1x16xf32>
    %33 = vector.shape_cast %32 : vector<1x1x16xf32> to vector<1x16xf32>
    %34 = vector.shape_cast %31 : vector<1x16xf32> to vector<1x1x16xf32>
    tpu.vector_store %arg8[%c0_21, %c0_22, %c0_23], %34 {strides = array<i32>} : memref<1x1x16xf32, #tpu.memory_space<vmem>>, vector<1x1x16xf32>,
    return
  }
  func.func @transform_0(%arg0: i32) -> (i32, i32) {
    %c0_i32 = arith.constant 0 : i32
    %c0_i32_0 = arith.constant 0 : i32
    return %arg0, %c0_i32 : i32, i32
  }
  func.func @transform_1(%arg0: i32) -> (i32, i32) {
    %c0_i32 = arith.constant 0 : i32
    %c0_i32_0 = arith.constant 0 : i32
    %c0_i32_1 = arith.constant 0 : i32
    return %c0_i32, %c0_i32_0 : i32, i32
  }
  func.func @transform_2(%arg0: i32) -> (i32, i32) {
    %c0_i32 = arith.constant 0 : i32
    %c0_i32_0 = arith.constant 0 : i32
    %c0_i32_1 = arith.constant 0 : i32
    return %c0_i32, %c0_i32_0 : i32, i32
  }
  func.func @transform_3(%arg0: i32) -> (i32, i32) {
    %c0_i32 = arith.constant 0 : i32
    %c0_i32_0 = arith.constant 0 : i32
    %c0_i32_1 = arith.constant 0 : i32
    return %c0_i32, %c0_i32_0 : i32, i32
  }
  func.func @transform_4(%arg0: i32) -> (i32, i32) {
    %c0_i32 = arith.constant 0 : i32
    %c0_i32_0 = arith.constant 0 : i32
    %c0_i32_1 = arith.constant 0 : i32
    return %c0_i32, %c0_i32_0 : i32, i32
  }
  func.func @transform_5(%arg0: i32) -> (i32, i32) {
    %c0_i32 = arith.constant 0 : i32
    %c0_i32_0 = arith.constant 0 : i32
    %c0_i32_1 = arith.constant 0 : i32
    return %c0_i32, %c0_i32_0 : i32, i32
  }
  func.func @transform_6(%arg0: i32) -> (i32, i32) {
    %c0_i32 = arith.constant 0 : i32
    %c0_i32_0 = arith.constant 0 : i32
    %c0_i32_1 = arith.constant 0 : i32
    return %c0_i32, %c0_i32_0 : i32, i32
  }
  func.func @transform_7(%arg0: i32) -> (i32, i32, i32) {
    %c0_i32 = arith.constant 0 : i32
    %c0_i32_0 = arith.constant 0 : i32
    %c0_i32_1 = arith.constant 0 : i32
    return %arg0, %c0_i32, %c0_i32_0 : i32, i32, i32
  }
}

</mosaic_0001>

<llo_original>
// kernel: _forward_impl.1
$region0: #{_forward_impl.1}
  #allocation0 [shape = 'u32[]', space=smem, size = 0x4, offset = 0x4, fixed_abs, tag = 'smem constant byte address 0x4 - core index']
  #allocation1 [shape = 'u32[144,128]{1,0:T(1,128)}', space=vmem, size = 0x12000, scoped, tag = 'internal scratch']
  #allocation2 [shape = 'f32[1,1]{1,0:T(1,128)S(1)}', space=vmem, size = 0x200, scoped, tag = 'scoped memory for _forward_impl.1']
  %s0 = inlined_call_operand.vmem [shape: f32[16,32], index: 0, kind: input, shape index: {}]
  %s1 = inlined_call_operand.vmem [shape: f32[32,64], index: 1, kind: input, shape index: {}]
  %s2 = inlined_call_operand.vmem [shape: f32[1,64], index: 2, kind: input, shape index: {}]
  %s3 = inlined_call_operand.vmem [shape: f32[64,32], index: 3, kind: input, shape index: {}]
  %s4 = inlined_call_operand.vmem [shape: f32[1,32], index: 4, kind: input, shape index: {}]
  %s5 = inlined_call_operand.vmem [shape: f32[1,32], index: 5, kind: input, shape index: {}]
  %s6 = inlined_call_operand.<no memory space> [shape: f32[1,1], index: 6, kind: input, shape index: {}]
  %s7 = inlined_call_operand.vmem [shape: f32[1,1,16], index: 7, kind: output, shape index: {}]
  %s8 = sld [smem:[#allocation0]]
  $region38: #{_forward_impl.1} parent=0
    _
  %s10 = ssub.s32 1, %s8
  %s11 = scalar_select 0, %s10, %s8
  %v12 = vstv %s6
  %13 = vst [vmem:[#allocation2] sm:$0x1] %v12
  // Predicated region
  $region2: #{_forward_impl.1} parent=0 // pred_check
    _
  $region3: #{_forward_impl.1} parent=0 // pred_check_branch
    %15 = sbr.rel (0) target = $region5
  $region4: #{_forward_impl.1} parent=0 // pred_region
    _
  $region5: #{_forward_impl.1} parent=0 // pred_fallthru
    _
  // Predicated region
  $region6: #{_forward_impl.1} parent=0 // pred_check
    _
  $region7: #{_forward_impl.1} parent=0 // pred_check_branch
    %17 = sbr.rel (0) target = $region9
  $region8: #{_forward_impl.1} parent=0 // pred_region
    _
  $region9: #{_forward_impl.1} parent=0 // pred_fallthru
    _
  // Predicated region
  $region10: #{_forward_impl.1} parent=0 // pred_check
    _
  $region11: #{_forward_impl.1} parent=0 // pred_check_branch
    %19 = sbr.rel (0) target = $region13
  $region12: #{_forward_impl.1} parent=0 // pred_region
    _
  $region13: #{_forward_impl.1} parent=0 // pred_fallthru
    _
  // Predicated region
  $region14: #{_forward_impl.1} parent=0 // pred_check
    _
  $region15: #{_forward_impl.1} parent=0 // pred_check_branch
    %21 = sbr.rel (0) target = $region17
  $region16: #{_forward_impl.1} parent=0 // pred_region
    _
  $region17: #{_forward_impl.1} parent=0 // pred_fallthru
    _
  // Predicated region
  $region18: #{_forward_impl.1} parent=0 // pred_check
    _
  $region19: #{_forward_impl.1} parent=0 // pred_check_branch
    %23 = sbr.rel (0) target = $region21
  $region20: #{_forward_impl.1} parent=0 // pred_region
    _
  $region21: #{_forward_impl.1} parent=0 // pred_fallthru
    _
  // Predicated region
  $region22: #{_forward_impl.1} parent=0 // pred_check
    _
  $region23: #{_forward_impl.1} parent=0 // pred_check_branch
    %25 = sbr.rel (0) target = $region25
  $region24: #{_forward_impl.1} parent=0 // pred_region
    _
  $region25: #{_forward_impl.1} parent=0 // pred_fallthru
    _
  // Predicated region
  $region26: #{_forward_impl.1} parent=0 // pred_check
    _
  $region27: #{_forward_impl.1} parent=0 // pred_check_branch
    %27 = sbr.rel (0) target = $region29
  $region28: #{_forward_impl.1} parent=0 // pred_region
    _
  $region29: #{_forward_impl.1} parent=0 // pred_fallthru
    _
  %v28 = vld [vmem:[%s0] sm:$0xff]
  %v29 = vld [vmem:[%s0 + $0x8] sm:$0xff]
  %v30 = vld [vmem:[%s1] sm:$0xff]
  %v31 = vld [vmem:[%s1 + $0x8] sm:$0xff]
  %v32 = vld [vmem:[%s1 + $0x10] sm:$0xff]
  %v33 = vld [vmem:[%s1 + $0x18] sm:$0xff]
  %v34 = vld [vmem:[%s2] sm:$0x1]
  %v36 = vlaneseq
  %v37 = vshrl.u32 %v36, 7
  %v38 = vsub.s32 0, %v37
  %v39 = vrot.slane %v34, %v38
  %vm41 = vcmask 261120
  %v43 = vsel %vm41, %v28, 0
  %v46 = vsel %vm41, %v29, 0
  %48 = vmatprep.subr.mxu0 0.0
  %49 = vmatpush1.msra.mxu0 %v30
  %50 = vmatprep.subr.mxu0 0.0
  %51 = vmatpush1.msra.mxu0 %v31
  %52 = vmatprep.subr.mxu0 0.0
  %53 = vmatpush1.msra.mxu0 %v32
  %54 = vmatprep.subr.mxu0 0.0
  %55 = vmatpush1.msra.mxu0 %v33
  %56 = vmatprep.subr.mxu0 0.0
  %57 = vmatpush1.msra.mxu0 0.0
  %58 = vmatprep.subr.mxu0 0.0
  %59 = vmatpush1.msra.mxu0 0.0
  %60 = vmatprep.subr.mxu0 0.0
  %61 = vmatpush1.msra.mxu0 0.0
  %62 = vmatprep.subr.mxu0 0.0
  %63 = vmatpush1.msra.mxu0 0.0
  %64 = vmatprep.subr.mxu0 0.0
  %65 = vmatpush1.msra.mxu0 0.0
  %66 = vmatprep.subr.mxu0 0.0
  %67 = vmatpush1.msra.mxu0 0.0
  %68 = vmatprep.subr.mxu0 0.0
  %69 = vmatpush1.msra.mxu0 0.0
  %70 = vmatprep.subr.mxu0 0.0
  %71 = vmatpush1.msra.mxu0 0.0
  %72 = vmatprep.subr.mxu0 0.0
  %73 = vmatpush1.msra.mxu0 0.0
  %74 = vmatprep.subr.mxu0 0.0
  %75 = vmatpush1.msra.mxu0 0.0
  %76 = vmatprep.subr.mxu0 0.0
  %77 = vmatpush1.msra.mxu0 0.0
  %78 = vmatprep.subr.mxu0 0.0
  %79 = vmatpush1.msra.mxu0 0.0
  %80 = vmatprep.subr.mxu0 0.0
  %81 = vmatpush1.msra.mxu0 0.0
  %82 = vmatprep.subr.mxu0 0.0
  %83 = vmatpush1.msra.mxu0 0.0
  %84 = vmatprep.subr.mxu0 0.0
  %85 = vmatpush1.msra.mxu0 0.0
  %86 = vmatprep.subr.mxu0 0.0
  %87 = vmatpush1.msra.mxu0 0.0
  %88 = vmatprep.subr.mxu0 0.0
  %89 = vmatpush1.msra.mxu0 0.0
  %90 = vmatprep.subr.mxu0 0.0
  %91 = vmatpush1.msra.mxu0 0.0
  %92 = vmatprep.subr.mxu0 0.0
  %93 = vmatpush1.msra.mxu0 0.0
  %94 = vmatprep.subr.mxu0 0.0
  %95 = vmatpush1.msra.mxu0 0.0
  %96 = vmatprep.subr.mxu0 0.0
  %97 = vmatpush1.msra.mxu0 0.0
  %98 = vmatprep.subr.mxu0 0.0
  %99 = vmatpush1.msra.mxu0 0.0
  %100 = vmatprep.subr.mxu0 0.0
  %101 = vmatpush1.msra.mxu0 0.0
  %102 = vmatprep.subr.mxu0 0.0
  %103 = vmatpush1.msra.mxu0 0.0
  %104 = vmatprep.subr.mxu0 0.0
  %105 = vmatpush1.msra.mxu0 0.0
  %106 = vmatprep.subr.mxu0 0.0
  %107 = vmatpush1.msra.mxu0 0.0
  %108 = vmatprep.subr.mxu0 0.0
  %109 = vmatpush1.msra.mxu0 0.0
  %110 = vmatprep.subr.mxu0 0.0
  %111 = vmatpush1.msra.mxu0 0.0
  %112 = vmatprep.mubr.f32.mxu0 0.0
  %113 = vmatmul.mubr.f32.gmra.mrb[0].mxu0 %v43
  %v114 = vpop.f32.mrb[0].mxu0
  %v115 = vadd.f32 %v39, %v114
  %v116 = vpop.f32.mrb[0].mxu0
  %117 = vmatprep.mubr.f32.mxu0 0.0
  %118 = vmatmul.mubr.f32.gmra.mrb[0].mxu0 %v46
  %v119 = vpop.f32.mrb[0].mxu0
  %v120 = vadd.f32 %v39, %v119
  %v121 = vpop.f32.mrb[0].mxu0
  %122 = vdwg.mxu0
  %v123 = vmul.f32 %v115, 0.5
  %v124 = vmul.f32 %v120, 0.5
  %v125 = vmul.f32 %v115, 0.70710677
  %v126 = vmul.f32 %v120, 0.70710677
  %v127 = verf.f32.pop %v125
  %v128 = verf.f32.pop %v126
  %v129 = vadd.f32 %v127, 1.0
  %v130 = vadd.f32 %v128, 1.0
  %v131 = vmul.f32 %v123, %v129
  %v132 = vmul.f32 %v124, %v130
  %v133 = vld [vmem:[%s3] sm:$0xff]
  %v134 = vld [vmem:[%s3 + $0x8] sm:$0xff]
  %v135 = vld [vmem:[%s3 + $0x10] sm:$0xff]
  %v136 = vld [vmem:[%s3 + $0x18] sm:$0xff]
  %v137 = vld [vmem:[%s3 + $0x20] sm:$0xff]
  %v138 = vld [vmem:[%s3 + $0x28] sm:$0xff]
  %v139 = vld [vmem:[%s3 + $0x30] sm:$0xff]
  %v140 = vld [vmem:[%s3 + $0x38] sm:$0xff]
  %v141 = vld [vmem:[%s4] sm:$0x1]
  %v143 = vlaneseq
  %v144 = vshrl.u32 %v143, 7
  %v145 = vsub.s32 0, %v144
  %v146 = vrot.slane %v141, %v145
  %vm148 = vcmask 523264
  %v150 = vsel %vm148, %v131, 0
  %v153 = vsel %vm148, %v132, 0
  %155 = vmatprep.subr.mxu0 0.0
  %156 = vmatpush1.msra.mxu0 %v133
  %157 = vmatprep.subr.mxu0 0.0
  %158 = vmatpush1.msra.mxu0 %v134
  %159 = vmatprep.subr.mxu0 0.0
  %160 = vmatpush1.msra.mxu0 %v135
  %161 = vmatprep.subr.mxu0 0.0
  %162 = vmatpush1.msra.mxu0 %v136
  %163 = vmatprep.subr.mxu0 0.0
  %164 = vmatpush1.msra.mxu0 %v137
  %165 = vmatprep.subr.mxu0 0.0
  %166 = vmatpush1.msra.mxu0 %v138
  %167 = vmatprep.subr.mxu0 0.0
  %168 = vmatpush1.msra.mxu0 %v139
  %169 = vmatprep.subr.mxu0 0.0
  %170 = vmatpush1.msra.mxu0 %v140
  %171 = vmatprep.subr.mxu0 0.0
  %172 = vmatpush1.msra.mxu0 0.0
  %173 = vmatprep.subr.mxu0 0.0
  %174 = vmatpush1.msra.mxu0 0.0
  %175 = vmatprep.subr.mxu0 0.0
  %176 = vmatpush1.msra.mxu0 0.0
  %177 = vmatprep.subr.mxu0 0.0
  %178 = vmatpush1.msra.mxu0 0.0
  %179 = vmatprep.subr.mxu0 0.0
  %180 = vmatpush1.msra.mxu0 0.0
  %181 = vmatprep.subr.mxu0 0.0
  %182 = vmatpush1.msra.mxu0 0.0
  %183 = vmatprep.subr.mxu0 0.0
  %184 = vmatpush1.msra.mxu0 0.0
  %185 = vmatprep.subr.mxu0 0.0
  %186 = vmatpush1.msra.mxu0 0.0
  %187 = vmatprep.subr.mxu0 0.0
  %188 = vmatpush1.msra.mxu0 0.0
  %189 = vmatprep.subr.mxu0 0.0
  %190 = vmatpush1.msra.mxu0 0.0
  %191 = vmatprep.subr.mxu0 0.0
  %192 = vmatpush1.msra.mxu0 0.0
  %193 = vmatprep.subr.mxu0 0.0
  %194 = vmatpush1.msra.mxu0 0.0
  %195 = vmatprep.subr.mxu0 0.0
  %196 = vmatpush1.msra.mxu0 0.0
  %197 = vmatprep.subr.mxu0 0.0
  %198 = vmatpush1.msra.mxu0 0.0
  %199 = vmatprep.subr.mxu0 0.0
  %200 = vmatpush1.msra.mxu0 0.0
  %201 = vmatprep.subr.mxu0 0.0
  %202 = vmatpush1.msra.mxu0 0.0
  %203 = vmatprep.subr.mxu0 0.0
  %204 = vmatpush1.msra.mxu0 0.0
  %205 = vmatprep.subr.mxu0 0.0
  %206 = vmatpush1.msra.mxu0 0.0
  %207 = vmatprep.subr.mxu0 0.0
  %208 = vmatpush1.msra.mxu0 0.0
  %209 = vmatprep.subr.mxu0 0.0
  %210 = vmatpush1.msra.mxu0 0.0
  %211 = vmatprep.subr.mxu0 0.0
  %212 = vmatpush1.msra.mxu0 0.0
  %213 = vmatprep.subr.mxu0 0.0
  %214 = vmatpush1.msra.mxu0 0.0
  %215 = vmatprep.subr.mxu0 0.0
  %216 = vmatpush1.msra.mxu0 0.0
  %217 = vmatprep.subr.mxu0 0.0
  %218 = vmatpush1.msra.mxu0 0.0
  %219 = vmatprep.mubr.f32.mxu0 0.0
  %220 = vmatmul.mubr.f32.gmra.mrb[0].mxu0 %v150
  %v221 = vpop.f32.mrb[0].mxu0
  %v222 = vadd.f32 %v146, %v221
  %v223 = vpop.f32.mrb[0].mxu0
  %224 = vmatprep.mubr.f32.mxu0 0.0
  %225 = vmatmul.mubr.f32.gmra.mrb[0].mxu0 %v153
  %v226 = vpop.f32.mrb[0].mxu0
  %v227 = vadd.f32 %v146, %v226
  %v228 = vpop.f32.mrb[0].mxu0
  %229 = vdwg.mxu0
  %v230 = vmul.f32 %v222, 0.5
  %v231 = vmul.f32 %v227, 0.5
  %v232 = vmul.f32 %v222, 0.70710677
  %v233 = vmul.f32 %v227, 0.70710677
  %v234 = verf.f32.pop %v232
  %v235 = verf.f32.pop %v233
  %v236 = vadd.f32 %v234, 1.0
  %v237 = vadd.f32 %v235, 1.0
  %v238 = vmul.f32 %v230, %v236
  %v239 = vmul.f32 %v231, %v237
  %v240 = vld [vmem:[%s5] sm:$0x1]
  %v241 = vld [vmem:[#allocation2] sm:$0x1]
  %243 = vset.pattern.permute.xlu0 0
  %244 = vperm.xlu0 %243, %v241
  %v245 = vpop.permute.xlu0 %244
  %v247 = vlaneseq
  %v248 = vshrl.u32 %v247, 7
  %v249 = vsub.s32 0, %v248
  %v250 = vrot.slane %v245, %v249
  %v252 = vsel %vm41, %v240, 0
  %v255 = vsel %vm41, %v238, 0
  %v258 = vsel %vm41, %v239, 0
  %260 = vmatprep.subr.mxu0 0.0
  %261 = vmatpush1.xpose.msra.mxu0 %v255
  %262 = vmatprep.subr.mxu0 0.0
  %263 = vmatpush1.xpose.msra.mxu0 %v258
  %264 = vmatprep.subr.mxu0 0.0
  %265 = vmatpush1.xpose.msra.mxu0 0.0
  %266 = vmatprep.subr.mxu0 0.0
  %267 = vmatpush1.xpose.msra.mxu0 0.0
  %268 = vmatprep.subr.mxu0 0.0
  %269 = vmatpush1.xpose.msra.mxu0 0.0
  %270 = vmatprep.subr.mxu0 0.0
  %271 = vmatpush1.xpose.msra.mxu0 0.0
  %272 = vmatprep.subr.mxu0 0.0
  %273 = vmatpush1.xpose.msra.mxu0 0.0
  %274 = vmatprep.subr.mxu0 0.0
  %275 = vmatpush1.xpose.msra.mxu0 0.0
  %276 = vmatprep.subr.mxu0 0.0
  %277 = vmatpush1.xpose.msra.mxu0 0.0
  %278 = vmatprep.subr.mxu0 0.0
  %279 = vmatpush1.xpose.msra.mxu0 0.0
  %280 = vmatprep.subr.mxu0 0.0
  %281 = vmatpush1.xpose.msra.mxu0 0.0
  %282 = vmatprep.subr.mxu0 0.0
  %283 = vmatpush1.xpose.msra.mxu0 0.0
  %284 = vmatprep.subr.mxu0 0.0
  %285 = vmatpush1.xpose.msra.mxu0 0.0
  %286 = vmatprep.subr.mxu0 0.0
  %287 = vmatpush1.xpose.msra.mxu0 0.0
  %288 = vmatprep.subr.mxu0 0.0
  %289 = vmatpush1.xpose.msra.mxu0 0.0
  %290 = vmatprep.subr.mxu0 0.0
  %291 = vmatpush1.xpose.msra.mxu0 0.0
  %292 = vmatprep.subr.mxu0 0.0
  %293 = vmatpush1.xpose.msra.mxu0 0.0
  %294 = vmatprep.subr.mxu0 0.0
  %295 = vmatpush1.xpose.msra.mxu0 0.0
  %296 = vmatprep.subr.mxu0 0.0
  %297 = vmatpush1.xpose.msra.mxu0 0.0
  %298 = vmatprep.subr.mxu0 0.0
  %299 = vmatpush1.xpose.msra.mxu0 0.0
  %300 = vmatprep.subr.mxu0 0.0
  %301 = vmatpush1.xpose.msra.mxu0 0.0
  %302 = vmatprep.subr.mxu0 0.0
  %303 = vmatpush1.xpose.msra.mxu0 0.0
  %304 = vmatprep.subr.mxu0 0.0
  %305 = vmatpush1.xpose.msra.mxu0 0.0
  %306 = vmatprep.subr.mxu0 0.0
  %307 = vmatpush1.xpose.msra.mxu0 0.0
  %308 = vmatprep.subr.mxu0 0.0
  %309 = vmatpush1.xpose.msra.mxu0 0.0
  %310 = vmatprep.subr.mxu0 0.0
  %311 = vmatpush1.xpose.msra.mxu0 0.0
  %312 = vmatprep.subr.mxu0 0.0
  %313 = vmatpush1.xpose.msra.mxu0 0.0
  %314 = vmatprep.subr.mxu0 0.0
  %315 = vmatpush1.xpose.msra.mxu0 0.0
  %316 = vmatprep.subr.mxu0 0.0
  %317 = vmatpush1.xpose.msra.mxu0 0.0
  %318 = vmatprep.subr.mxu0 0.0
  %319 = vmatpush1.xpose.msra.mxu0 0.0
  %320 = vmatprep.subr.mxu0 0.0
  %321 = vmatpush1.xpose.msra.mxu0 0.0
  %322 = vmatprep.subr.mxu0 0.0
  %323 = vmatpush1.xpose.msra.mxu0 0.0
  %324 = vmatprep.mubr.f32.mxu0 0.0
  %325 = vmatmul.mubr.f32.gmra.mrb[0].mxu0 %v252
  %v326 = vpop.f32.mrb[0].mxu0
  %v327 = vadd.f32 %v250, %v326
  %v328 = vpop.f32.mrb[0].mxu0
  %329 = vdwg.mxu0
  %vm330 = vcmask 122880
  %331 = vst.msk [vmem:[%s7] sm:$0x1] %vm330, %v327
  // Predicated region
  $region30: #{_forward_impl.1} parent=0 // pred_check
    _
  $region31: #{_forward_impl.1} parent=0 // pred_check_branch
    %333 = sbr.rel (0) target = $region33
  $region32: #{_forward_impl.1} parent=0 // pred_region
    _
  $region33: #{_forward_impl.1} parent=0 // pred_fallthru
    _
  // Predicated region
  $region34: #{_forward_impl.1} parent=0 // pred_check
    _
  $region35: #{_forward_impl.1} parent=0 // pred_check_branch
    %335 = sbr.rel (0) target = $region37
  $region36: #{_forward_impl.1} parent=0 // pred_region
    _
  $region37: #{_forward_impl.1} parent=0 // pred_fallthru
    _

// kernel: _forward_impl.1
$region0: #{_forward_impl.1}
  #allocation0 [shape = 'u32[]', space=smem, size = 0x4, offset = 0x4, fixed_abs, tag = 'smem constant byte address 0x4 - core index']
  #allocation1 [shape = 'u32[144,128]{1,0:T(1,128)}', space=vmem, size = 0x12000, scoped, tag = 'internal scratch']
  #allocation2 [shape = 'f32[1,1]{1,0:T(1,128)S(1)}', space=vmem, size = 0x200, scoped, tag = 'scoped memory for _forward_impl.1']
  %s0 = inlined_call_operand.vmem [shape: f32[16,32], index: 0, kind: input, shape index: {}]
  %s1 = inlined_call_operand.vmem [shape: f32[32,64], index: 1, kind: input, shape index: {}]
  %s2 = inlined_call_operand.vmem [shape: f32[1,64], index: 2, kind: input, shape index: {}]
  %s3 = inlined_call_operand.vmem [shape: f32[64,32], index: 3, kind: input, shape index: {}]
  %s4 = inlined_call_operand.vmem [shape: f32[1,32], index: 4, kind: input, shape index: {}]
  %s5 = inlined_call_operand.vmem [shape: f32[1,32], index: 5, kind: input, shape index: {}]
  %s6 = inlined_call_operand.<no memory space> [shape: f32[1,1], index: 6, kind: input, shape index: {}]
  %s7 = inlined_call_operand.vmem [shape: f32[1,1,16], index: 7, kind: output, shape index: {}]
  %s8 = sld [smem:[#allocation0]]
  $region38: #{_forward_impl.1} parent=0
    _
  %s10 = ssub.s32 1, %s8
  %s11 = scalar_select 0, %s10, %s8
  %v12 = vstv %s6
  %13 = vst [vmem:[#allocation2] sm:$0x1] %v12
  // Predicated region
  $region2: #{_forward_impl.1} parent=0 // pred_check
    _
  $region3: #{_forward_impl.1} parent=0 // pred_check_branch
    %15 = sbr.rel (0) target = $region5
  $region4: #{_forward_impl.1} parent=0 // pred_region
    _
  $region5: #{_forward_impl.1} parent=0 // pred_fallthru
    _
  // Predicated region
  $region6: #{_forward_impl.1} parent=0 // pred_check
    _
  $region7: #{_forward_impl.1} parent=0 // pred_check_branch
    %17 = sbr.rel (0) target = $region9
  $region8: #{_forward_impl.1} parent=0 // pred_region
    _
  $region9: #{_forward_impl.1} parent=0 // pred_fallthru
    _
  // Predicated region
  $region10: #{_forward_impl.1} parent=0 // pred_check
    _
  $region11: #{_forward_impl.1} parent=0 // pred_check_branch
    %19 = sbr.rel (0) target = $region13
  $region12: #{_forward_impl.1} parent=0 // pred_region
    _
  $region13: #{_forward_impl.1} parent=0 // pred_fallthru
    _
  // Predicated region
  $region14: #{_forward_impl.1} parent=0 // pred_check
    _
  $region15: #{_forward_impl.1} parent=0 // pred_check_branch
    %21 = sbr.rel (0) target = $region17
  $region16: #{_forward_impl.1} parent=0 // pred_region
    _
  $region17: #{_forward_impl.1} parent=0 // pred_fallthru
    _
  // Predicated region
  $region18: #{_forward_impl.1} parent=0 // pred_check
    _
  $region19: #{_forward_impl.1} parent=0 // pred_check_branch
    %23 = sbr.rel (0) target = $region21
  $region20: #{_forward_impl.1} parent=0 // pred_region
    _
  $region21: #{_forward_impl.1} parent=0 // pred_fallthru
    _
  // Predicated region
  $region22: #{_forward_impl.1} parent=0 // pred_check
    _
  $region23: #{_forward_impl.1} parent=0 // pred_check_branch
    %25 = sbr.rel (0) target = $region25
  $region24: #{_forward_impl.1} parent=0 // pred_region
    _
  $region25: #{_forward_impl.1} parent=0 // pred_fallthru
    _
  // Predicated region
  $region26: #{_forward_impl.1} parent=0 // pred_check
    _
  $region27: #{_forward_impl.1} parent=0 // pred_check_branch
    %27 = sbr.rel (0) target = $region29
  $region28: #{_forward_impl.1} parent=0 // pred_region
    _
  $region29: #{_forward_impl.1} parent=0 // pred_fallthru
    _
  %v28 = vld [vmem:[%s0] sm:$0xff]
  %v29 = vld [vmem:[%s0 + $0x8] sm:$0xff]
  %v30 = vld [vmem:[%s1] sm:$0xff]
  %v31 = vld [vmem:[%s1 + $0x8] sm:$0xff]
  %v32 = vld [vmem:[%s1 + $0x10] sm:$0xff]
  %v33 = vld [vmem:[%s1 + $0x18] sm:$0xff]
  %v34 = vld [vmem:[%s2] sm:$0x1]
  %v36 = vlaneseq
  %v37 = vshrl.u32 %v36, 7
  %v38 = vsub.s32 0, %v37
  %v39 = vrot.slane %v34, %v38
  %vm41 = vcmask 261120
  %v43 = vsel %vm41, %v28, 0
  %v46 = vsel %vm41, %v29, 0
  %48 = vmatprep.subr.mxu0 0.0
  %49 = vmatpush1.msra.mxu0 %v30
  %50 = vmatprep.subr.mxu0 0.0
  %51 = vmatpush1.msra.mxu0 %v31
  %52 = vmatprep.subr.mxu0 0.0
  %53 = vmatpush1.msra.mxu0 %v32
  %54 = vmatprep.subr.mxu0 0.0
  %55 = vmatpush1.msra.mxu0 %v33
  %56 = vmatprep.subr.mxu0 0.0
  %57 = vmatpush1.msra.mxu0 0.0
  %58 = vmatprep.subr.mxu0 0.0
  %59 = vmatpush1.msra.mxu0 0.0
  %60 = vmatprep.subr.mxu0 0.0
  %61 = vmatpush1.msra.mxu0 0.0
  %62 = vmatprep.subr.mxu0 0.0
  %63 = vmatpush1.msra.mxu0 0.0
  %64 = vmatprep.subr.mxu0 0.0
  %65 = vmatpush1.msra.mxu0 0.0
  %66 = vmatprep.subr.mxu0 0.0
  %67 = vmatpush1.msra.mxu0 0.0
  %68 = vmatprep.subr.mxu0 0.0
  %69 = vmatpush1.msra.mxu0 0.0
  %70 = vmatprep.subr.mxu0 0.0
  %71 = vmatpush1.msra.mxu0 0.0
  %72 = vmatprep.subr.mxu0 0.0
  %73 = vmatpush1.msra.mxu0 0.0
  %74 = vmatprep.subr.mxu0 0.0
  %75 = vmatpush1.msra.mxu0 0.0
  %76 = vmatprep.subr.mxu0 0.0
  %77 = vmatpush1.msra.mxu0 0.0
  %78 = vmatprep.subr.mxu0 0.0
  %79 = vmatpush1.msra.mxu0 0.0
  %80 = vmatprep.subr.mxu0 0.0
  %81 = vmatpush1.msra.mxu0 0.0
  %82 = vmatprep.subr.mxu0 0.0
  %83 = vmatpush1.msra.mxu0 0.0
  %84 = vmatprep.subr.mxu0 0.0
  %85 = vmatpush1.msra.mxu0 0.0
  %86 = vmatprep.subr.mxu0 0.0
  %87 = vmatpush1.msra.mxu0 0.0
  %88 = vmatprep.subr.mxu0 0.0
  %89 = vmatpush1.msra.mxu0 0.0
  %90 = vmatprep.subr.mxu0 0.0
  %91 = vmatpush1.msra.mxu0 0.0
  %92 = vmatprep.subr.mxu0 0.0
  %93 = vmatpush1.msra.mxu0 0.0
  %94 = vmatprep.subr.mxu0 0.0
  %95 = vmatpush1.msra.mxu0 0.0
  %96 = vmatprep.subr.mxu0 0.0
  %97 = vmatpush1.msra.mxu0 0.0
  %98 = vmatprep.subr.mxu0 0.0
  %99 = vmatpush1.msra.mxu0 0.0
  %100 = vmatprep.subr.mxu0 0.0
  %101 = vmatpush1.msra.mxu0 0.0
  %102 = vmatprep.subr.mxu0 0.0
  %103 = vmatpush1.msra.mxu0 0.0
  %104 = vmatprep.subr.mxu0 0.0
  %105 = vmatpush1.msra.mxu0 0.0
  %106 = vmatprep.subr.mxu0 0.0
  %107 = vmatpush1.msra.mxu0 0.0
  %108 = vmatprep.subr.mxu0 0.0
  %109 = vmatpush1.msra.mxu0 0.0
  %110 = vmatprep.subr.mxu0 0.0
  %111 = vmatpush1.msra.mxu0 0.0
  %112 = vmatprep.mubr.f32.mxu0 0.0
  %113 = vmatmul.mubr.f32.gmra.mrb[0].mxu0 %v43
  %v114 = vpop.f32.mrb[0].mxu0
  %v115 = vadd.f32 %v39, %v114
  %v116 = vpop.f32.mrb[0].mxu0
  %117 = vmatprep.mubr.f32.mxu0 0.0
  %118 = vmatmul.mubr.f32.gmra.mrb[0].mxu0 %v46
  %v119 = vpop.f32.mrb[0].mxu0
  %v120 = vadd.f32 %v39, %v119
  %v121 = vpop.f32.mrb[0].mxu0
  %122 = vdwg.mxu0
  %v123 = vmul.f32 %v115, 0.5
  %v124 = vmul.f32 %v120, 0.5
  %v125 = vmul.f32 %v115, 0.70710677
  %v126 = vmul.f32 %v120, 0.70710677
  %v127 = verf.f32.pop %v125
  %v128 = verf.f32.pop %v126
  %v129 = vadd.f32 %v127, 1.0
  %v130 = vadd.f32 %v128, 1.0
  %v131 = vmul.f32 %v123, %v129
  %v132 = vmul.f32 %v124, %v130
  %v133 = vld [vmem:[%s3] sm:$0xff]
  %v134 = vld [vmem:[%s3 + $0x8] sm:$0xff]
  %v135 = vld [vmem:[%s3 + $0x10] sm:$0xff]
  %v136 = vld [vmem:[%s3 + $0x18] sm:$0xff]
  %v137 = vld [vmem:[%s3 + $0x20] sm:$0xff]
  %v138 = vld [vmem:[%s3 + $0x28] sm:$0xff]
  %v139 = vld [vmem:[%s3 + $0x30] sm:$0xff]
  %v140 = vld [vmem:[%s3 + $0x38] sm:$0xff]
  %v141 = vld [vmem:[%s4] sm:$0x1]
  %v143 = vlaneseq
  %v144 = vshrl.u32 %v143, 7
  %v145 = vsub.s32 0, %v144
  %v146 = vrot.slane %v141, %v145
  %vm148 = vcmask 523264
  %v150 = vsel %vm148, %v131, 0
  %v153 = vsel %vm148, %v132, 0
  %155 = vmatprep.subr.mxu0 0.0
  %156 = vmatpush1.msra.mxu0 %v133
  %157 = vmatprep.subr.mxu0 0.0
  %158 = vmatpush1.msra.mxu0 %v134
  %159 = vmatprep.subr.mxu0 0.0
  %160 = vmatpush1.msra.mxu0 %v135
  %161 = vmatprep.subr.mxu0 0.0
  %162 = vmatpush1.msra.mxu0 %v136
  %163 = vmatprep.subr.mxu0 0.0
  %164 = vmatpush1.msra.mxu0 %v137
  %165 = vmatprep.subr.mxu0 0.0
  %166 = vmatpush1.msra.mxu0 %v138
  %167 = vmatprep.subr.mxu0 0.0
  %168 = vmatpush1.msra.mxu0 %v139
  %169 = vmatprep.subr.mxu0 0.0
  %170 = vmatpush1.msra.mxu0 %v140
  %171 = vmatprep.subr.mxu0 0.0
  %172 = vmatpush1.msra.mxu0 0.0
  %173 = vmatprep.subr.mxu0 0.0
  %174 = vmatpush1.msra.mxu0 0.0
  %175 = vmatprep.subr.mxu0 0.0
  %176 = vmatpush1.msra.mxu0 0.0
  %177 = vmatprep.subr.mxu0 0.0
  %178 = vmatpush1.msra.mxu0 0.0
  %179 = vmatprep.subr.mxu0 0.0
  %180 = vmatpush1.msra.mxu0 0.0
  %181 = vmatprep.subr.mxu0 0.0
  %182 = vmatpush1.msra.mxu0 0.0
  %183 = vmatprep.subr.mxu0 0.0
  %184 = vmatpush1.msra.mxu0 0.0
  %185 = vmatprep.subr.mxu0 0.0
  %186 = vmatpush1.msra.mxu0 0.0
  %187 = vmatprep.subr.mxu0 0.0
  %188 = vmatpush1.msra.mxu0 0.0
  %189 = vmatprep.subr.mxu0 0.0
  %190 = vmatpush1.msra.mxu0 0.0
  %191 = vmatprep.subr.mxu0 0.0
  %192 = vmatpush1.msra.mxu0 0.0
  %193 = vmatprep.subr.mxu0 0.0
  %194 = vmatpush1.msra.mxu0 0.0
  %195 = vmatprep.subr.mxu0 0.0
  %196 = vmatpush1.msra.mxu0 0.0
  %197 = vmatprep.subr.mxu0 0.0
  %198 = vmatpush1.msra.mxu0 0.0
  %199 = vmatprep.subr.mxu0 0.0
  %200 = vmatpush1.msra.mxu0 0.0
  %201 = vmatprep.subr.mxu0 0.0
  %202 = vmatpush1.msra.mxu0 0.0
  %203 = vmatprep.subr.mxu0 0.0
  %204 = vmatpush1.msra.mxu0 0.0
  %205 = vmatprep.subr.mxu0 0.0
  %206 = vmatpush1.msra.mxu0 0.0
  %207 = vmatprep.subr.mxu0 0.0
  %208 = vmatpush1.msra.mxu0 0.0
  %209 = vmatprep.subr.mxu0 0.0
  %210 = vmatpush1.msra.mxu0 0.0
  %211 = vmatprep.subr.mxu0 0.0
  %212 = vmatpush1.msra.mxu0 0.0
  %213 = vmatprep.subr.mxu0 0.0
  %214 = vmatpush1.msra.mxu0 0.0
  %215 = vmatprep.subr.mxu0 0.0
  %216 = vmatpush1.msra.mxu0 0.0
  %217 = vmatprep.subr.mxu0 0.0
  %218 = vmatpush1.msra.mxu0 0.0
  %219 = vmatprep.mubr.f32.mxu0 0.0
  %220 = vmatmul.mubr.f32.gmra.mrb[0].mxu0 %v150
  %v221 = vpop.f32.mrb[0].mxu0
  %v222 = vadd.f32 %v146, %v221
  %v223 = vpop.f32.mrb[0].mxu0
  %224 = vmatprep.mubr.f32.mxu0 0.0
  %225 = vmatmul.mubr.f32.gmra.mrb[0].mxu0 %v153
  %v226 = vpop.f32.mrb[0].mxu0
  %v227 = vadd.f32 %v146, %v226
  %v228 = vpop.f32.mrb[0].mxu0
  %229 = vdwg.mxu0
  %v230 = vmul.f32 %v222, 0.5
  %v231 = vmul.f32 %v227, 0.5
  %v232 = vmul.f32 %v222, 0.70710677
  %v233 = vmul.f32 %v227, 0.70710677
  %v234 = verf.f32.pop %v232
  %v235 = verf.f32.pop %v233
  %v236 = vadd.f32 %v234, 1.0
  %v237 = vadd.f32 %v235, 1.0
  %v238 = vmul.f32 %v230, %v236
  %v239 = vmul.f32 %v231, %v237
  %v240 = vld [vmem:[%s5] sm:$0x1]
  %v241 = vld [vmem:[#allocation2] sm:$0x1]
  %243 = vset.pattern.permute.xlu0 0
  %244 = vperm.xlu0 %243, %v241
  %v245 = vpop.permute.xlu0 %244
  %v247 = vlaneseq
  %v248 = vshrl.u32 %v247, 7
  %v249 = vsub.s32 0, %v248
  %v250 = vrot.slane %v245, %v249
  %v252 = vsel %vm41, %v240, 0
  %v255 = vsel %vm41, %v238, 0
  %v258 = vsel %vm41, %v239, 0
  %260 = vmatprep.subr.mxu0 0.0
  %261 = vmatpush1.xpose.msra.mxu0 %v255
  %262 = vmatprep.subr.mxu0 0.0
  %263 = vmatpush1.xpose.msra.mxu0 %v258
  %264 = vmatprep.subr.mxu0 0.0
  %265 = vmatpush1.xpose.msra.mxu0 0.0
  %266 = vmatprep.subr.mxu0 0.0
  %267 = vmatpush1.xpose.msra.mxu0 0.0
  %268 = vmatprep.subr.mxu0 0.0
  %269 = vmatpush1.xpose.msra.mxu0 0.0
  %270 = vmatprep.subr.mxu0 0.0
  %271 = vmatpush1.xpose.msra.mxu0 0.0
  %272 = vmatprep.subr.mxu0 0.0
  %273 = vmatpush1.xpose.msra.mxu0 0.0
  %274 = vmatprep.subr.mxu0 0.0
  %275 = vmatpush1.xpose.msra.mxu0 0.0
  %276 = vmatprep.subr.mxu0 0.0
  %277 = vmatpush1.xpose.msra.mxu0 0.0
  %278 = vmatprep.subr.mxu0 0.0
  %279 = vmatpush1.xpose.msra.mxu0 0.0
  %280 = vmatprep.subr.mxu0 0.0
  %281 = vmatpush1.xpose.msra.mxu0 0.0
  %282 = vmatprep.subr.mxu0 0.0
  %283 = vmatpush1.xpose.msra.mxu0 0.0
  %284 = vmatprep.subr.mxu0 0.0
  %285 = vmatpush1.xpose.msra.mxu0 0.0
  %286 = vmatprep.subr.mxu0 0.0
  %287 = vmatpush1.xpose.msra.mxu0 0.0
  %288 = vmatprep.subr.mxu0 0.0
  %289 = vmatpush1.xpose.msra.mxu0 0.0
  %290 = vmatprep.subr.mxu0 0.0
  %291 = vmatpush1.xpose.msra.mxu0 0.0
  %292 = vmatprep.subr.mxu0 0.0
  %293 = vmatpush1.xpose.msra.mxu0 0.0
  %294 = vmatprep.subr.mxu0 0.0
  %295 = vmatpush1.xpose.msra.mxu0 0.0
  %296 = vmatprep.subr.mxu0 0.0
  %297 = vmatpush1.xpose.msra.mxu0 0.0
  %298 = vmatprep.subr.mxu0 0.0
  %299 = vmatpush1.xpose.msra.mxu0 0.0
  %300 = vmatprep.subr.mxu0 0.0
  %301 = vmatpush1.xpose.msra.mxu0 0.0
  %302 = vmatprep.subr.mxu0 0.0
  %303 = vmatpush1.xpose.msra.mxu0 0.0
  %304 = vmatprep.subr.mxu0 0.0
  %305 = vmatpush1.xpose.msra.mxu0 0.0
  %306 = vmatprep.subr.mxu0 0.0
  %307 = vmatpush1.xpose.msra.mxu0 0.0
  %308 = vmatprep.subr.mxu0 0.0
  %309 = vmatpush1.xpose.msra.mxu0 0.0
  %310 = vmatprep.subr.mxu0 0.0
  %311 = vmatpush1.xpose.msra.mxu0 0.0
  %312 = vmatprep.subr.mxu0 0.0
  %313 = vmatpush1.xpose.msra.mxu0 0.0
  %314 = vmatprep.subr.mxu0 0.0
  %315 = vmatpush1.xpose.msra.mxu0 0.0
  %316 = vmatprep.subr.mxu0 0.0
  %317 = vmatpush1.xpose.msra.mxu0 0.0
  %318 = vmatprep.subr.mxu0 0.0
  %319 = vmatpush1.xpose.msra.mxu0 0.0
  %320 = vmatprep.subr.mxu0 0.0
  %321 = vmatpush1.xpose.msra.mxu0 0.0
  %322 = vmatprep.subr.mxu0 0.0
  %323 = vmatpush1.xpose.msra.mxu0 0.0
  %324 = vmatprep.mubr.f32.mxu0 0.0
  %325 = vmatmul.mubr.f32.gmra.mrb[0].mxu0 %v252
  %v326 = vpop.f32.mrb[0].mxu0
  %v327 = vadd.f32 %v250, %v326
  %v328 = vpop.f32.mrb[0].mxu0
  %329 = vdwg.mxu0
  %vm330 = vcmask 122880
  %331 = vst.msk [vmem:[%s7] sm:$0x1] %vm330, %v327
  // Predicated region
  $region30: #{_forward_impl.1} parent=0 // pred_check
    _
  $region31: #{_forward_impl.1} parent=0 // pred_check_branch
    %333 = sbr.rel (0) target = $region33
  $region32: #{_forward_impl.1} parent=0 // pred_region
    _
  $region33: #{_forward_impl.1} parent=0 // pred_fallthru
    _
  // Predicated region
  $region34: #{_forward_impl.1} parent=0 // pred_check
    _
  $region35: #{_forward_impl.1} parent=0 // pred_check_branch
    %335 = sbr.rel (0) target = $region37
  $region36: #{_forward_impl.1} parent=0 // pred_region
    _
  $region37: #{_forward_impl.1} parent=0 // pred_fallthru
    _

</llo_original>
